<compile_context>
chip_gen: v6e
topology: v6e:2x2x1
jax: 0.10.0
libtpu: 0.0.40
codegen_flags: <defaults>
</compile_context>

<pallas_src>
import jax
import jax.numpy as jnp
from jax.experimental import pallas as pl
from jax.experimental.pallas import tpu as pltpu


def _im2col_matmul_bias_kernel(x_ref, w_ref, b_ref, o_ref):
    # x_ref: (tile_m, Kc)   w_ref: (Kc, C_out_p)   b_ref: (1, C_out_p)
    # o_ref: (tile_m, C_out_p)
    acc = jnp.dot(x_ref[...], w_ref[...], preferred_element_type=jnp.float32)
    acc = acc + b_ref[...].astype(jnp.float32)          # bias in the epilogue
    o_ref[...] = acc.astype(o_ref.dtype)


def _round_up(x, m):
    return (x + m - 1) // m * m


def init_projection_forward(x, weight, bias, *, padding, tile_m=512):
    """x: (B, L, C_in); weight: (C_out, C_in, K) [PyTorch Conv1d layout]; bias: (C_out,)."""
    B, L, C_in = x.shape
    C_out, C_in_w, K = weight.shape
    assert C_in_w == C_in
    L_out = L + 2 * padding - K + 1
    assert L_out > 0

    Kc = K * C_in
    M = B * L_out

    # --- host-side glue (cheap: K*C_in columns, << C_out bytes) --------------
    # im2col over only the K taps; built per batch, then B and L_out flattened
    # into one M axis for the matmul.
    x_p = jnp.pad(x, ((0, 0), (padding, padding), (0, 0)))
    x_col = jnp.concatenate(
        [x_p[:, k:k + L_out, :] for k in range(K)], axis=-1
    ).reshape(M, Kc)                                       # (M, K*C_in)

    # weight (C_out, C_in, K) -> (K, C_in, C_out) -> (K*C_in, C_out)
    w = jnp.transpose(weight, (2, 1, 0)).reshape(Kc, C_out)

    # Lane-dense output: pad C_out up to a multiple of 128.
    C_out_p = _round_up(C_out, 128)
    # Tile the merged B*L_out axis; must be a multiple of 8 sublanes.
    tile_m = max(8, min(_round_up(tile_m, 8), _round_up(M, 8)))
    M_p = _round_up(M, tile_m)

    x_col = jnp.pad(x_col, ((0, M_p - M), (0, 0)))
    w = jnp.pad(w, ((0, 0), (0, C_out_p - C_out)))
    b = jnp.pad(bias, (0, C_out_p - C_out)).reshape(1, C_out_p)

    out_p = pl.pallas_call(
        _im2col_matmul_bias_kernel,
        out_shape=jax.ShapeDtypeStruct((M_p, C_out_p), x.dtype),
        grid_spec=pltpu.PrefetchScalarGridSpec(
            num_scalar_prefetch=0,
            grid=(M_p // tile_m,),
            in_specs=[
                pl.BlockSpec((tile_m, Kc), lambda m: (m, 0)),
                # Weight / bias blocks have a constant index map -> stay
                # resident in VMEM across all M tiles.
                pl.BlockSpec((Kc, C_out_p), lambda m: (0, 0)),
                pl.BlockSpec((1, C_out_p), lambda m: (0, 0)),
            ],
            out_specs=pl.BlockSpec((tile_m, C_out_p), lambda m: (m, 0)),
        ),
        compiler_params=pltpu.CompilerParams(
            dimension_semantics=("parallel",),
        ),
    )(x_col, w, b)

    # Strip M / lane padding and restore (B, L_out, C_out).
    return out_p[:M, :C_out].reshape(B, L_out, C_out)


if __name__ == "__main__":
    # Small shapes consistent with the module: batch=2, seq=16, in=4, out=8, k=3, pad=1.
    B, L, C_in, C_out, K, PAD = 2, 16, 4, 8, 3, 1

    key = jax.random.PRNGKey(0)
    kx, kw, kb = jax.random.split(key, 3)

    x = jax.random.normal(kx, (B, L, C_in), dtype=jnp.float32)
    # Deterministic synthetic params (PyTorch Conv1d weight layout: (C_out, C_in, K)).
    bound = 1.0 / (C_in * K) ** 0.5
    weight = jax.random.uniform(kw, (C_out, C_in, K), jnp.float32, -bound, bound)
    bias = jax.random.uniform(kb, (C_out,), jnp.float32, -bound, bound)

    out = init_projection_forward(x, weight, bias, padding=PAD)
    out = jax.block_until_ready(out)

    # Cross-check against a pure-JAX reference of the same conv.
    x_p = jnp.pad(x, ((0, 0), (PAD, PAD), (0, 0)))
    L_out = L + 2 * PAD - K + 1
    ref = bias[None, None, :] + sum(
        jnp.einsum("blc,co->blo", x_p[:, k:k + L_out, :], weight[:, :, k].T)
        for k in range(K)
    )
    assert out.shape == (B, L_out, C_out)
    assert jnp.allclose(out, ref, atol=1e-5, rtol=1e-5)

    print("KERNEL_OK")
</pallas_src>

<mosaic_0001>
module attributes {stable_mosaic.version = 11 : i64} {
  func.func @_im2col_matmul_bias_kernel(%arg0: i32, %arg1: memref<32x12xf32, #tpu.memory_space<vmem>>, %arg2: memref<12x128xf32, #tpu.memory_space<vmem>>, %arg3: memref<1x128xf32, #tpu.memory_space<vmem>>, %arg4: memref<32x128xf32, #tpu.memory_space<vmem>>) attributes {dimension_semantics = [#tpu.dimension_semantics<parallel>], iteration_bounds = array<i64: 1>, scalar_prefetch = 0 : i64, scratch_operands = 0 : i64, tpu.core_type = #tpu.core_type<tc>, window_params = [{transform_indices = @transform_0, window_bounds = array<i64: 32, 12>}, {pipeline_mode = #tpu.pipeline_mode<synchronous>, transform_indices = @transform_1, window_bounds = array<i64: 12, 128>}, {pipeline_mode = #tpu.pipeline_mode<synchronous>, transform_indices = @transform_2, window_bounds = array<i64: 1, 128>}, {transform_indices = @transform_3, window_bounds = array<i64: 32, 128>}]} {
    %c0 = arith.constant 0 : index
    %c0_0 = arith.constant 0 : index
    %0 = vector.load %arg1[%c0, %c0_0] : memref<32x12xf32, #tpu.memory_space<vmem>>, vector<32x12xf32>
    %c0_1 = arith.constant 0 : index
    %c0_2 = arith.constant 0 : index
    %1 = vector.load %arg2[%c0_1, %c0_2] : memref<12x128xf32, #tpu.memory_space<vmem>>, vector<12x128xf32>
    %cst = arith.constant dense<0.000000e+00> : vector<32x128xf32>
    %2 = tpu.matmul %0, %1, %cst {dimension_numbers = #tpu.dot_dimension_numbers<[1], [0], [0], [1], [0, 0, 1, 1], [], []>} : vector<32x12xf32>, vector<12x128xf32>, vector<32x128xf32> -> vector<32x128xf32>
    %c0_3 = arith.constant 0 : index
    %c0_4 = arith.constant 0 : index
    %3 = vector.load %arg3[%c0_3, %c0_4] : memref<1x128xf32, #tpu.memory_space<vmem>>, vector<1x128xf32>
    %4 = vector.broadcast %3 : vector<1x128xf32> to vector<32x128xf32>
    %5 = arith.addf %2, %4 : vector<32x128xf32>
    %c0_5 = arith.constant 0 : index
    %c0_6 = arith.constant 0 : index
    %6 = vector.load %arg4[%c0_5, %c0_6] : memref<32x128xf32, #tpu.memory_space<vmem>>, vector<32x128xf32>
    tpu.vector_store %arg4[%c0_5, %c0_6], %5 {strides = array<i32>} : memref<32x128xf32, #tpu.memory_space<vmem>>, vector<32x128xf32>,
    return
  }
  func.func @transform_0(%arg0: i32) -> (i32, i32) {
    %c0_i32 = arith.constant 0 : i32
    %c0_i32_0 = arith.constant 0 : i32
    return %arg0, %c0_i32 : i32, i32
  }
  func.func @transform_1(%arg0: i32) -> (i32, i32) {
    %c0_i32 = arith.constant 0 : i32
    %c0_i32_0 = arith.constant 0 : i32
    %c0_i32_1 = arith.constant 0 : i32
    return %c0_i32, %c0_i32_0 : i32, i32
  }
  func.func @transform_2(%arg0: i32) -> (i32, i32) {
    %c0_i32 = arith.constant 0 : i32
    %c0_i32_0 = arith.constant 0 : i32
    %c0_i32_1 = arith.constant 0 : i32
    return %c0_i32, %c0_i32_0 : i32, i32
  }
  func.func @transform_3(%arg0: i32) -> (i32, i32) {
    %c0_i32 = arith.constant 0 : i32
    %c0_i32_0 = arith.constant 0 : i32
    return %arg0, %c0_i32 : i32, i32
  }
}

</mosaic_0001>

<llo_original>
// kernel: tpu_custom_call.1
$region0: #{tpu_custom_call.1}
  #allocation0 [shape = 'u32[]', space=smem, size = 0x4, offset = 0x4, fixed_abs, tag = 'smem constant byte address 0x4 - core index']
  #allocation1 [shape = 'u32[144,128]{1,0:T(1,128)}', space=vmem, size = 0x12000, scoped, tag = 'internal scratch']
  %s0 = inlined_call_operand.vmem [shape: f32[32,12], index: 0, kind: input, shape index: {}]
  %s1 = inlined_call_operand.vmem [shape: f32[12,128], index: 1, kind: input, shape index: {}]
  %s2 = inlined_call_operand.vmem [shape: f32[1,128], index: 2, kind: input, shape index: {}]
  %s3 = inlined_call_operand.hbm [shape: f32[32,128], index: 3, kind: output, shape index: {}]
  %s4 = sld [smem:[#allocation0]]
  $region22: #{tpu_custom_call.1} parent=0
    _
  %s6 = ssub.s32 1, %s4
  %s7 = scalar_select 0, %s6, %s4
  $region1: #{tpu_custom_call.1} parent=0
    #allocation2 [shape = 'u8[16384]{0}', space=vmem, size = 0x4000, scoped, tag = 'output window, operand 0, single buffered']
    #allocation3 [shape = 's32[1]{0}', space=sflag, size = 0x4, scoped, tag = 'scoped memory for tpu_custom_call.1']
    %8 = vsyncpa [#allocation3], 0
    // Predicated region
    $region2: #{tpu_custom_call.1} parent=1 // pred_check
      _
    $region3: #{tpu_custom_call.1} parent=1 // pred_check_branch
      %10 = sbr.rel (0) target = $region5
    $region4: #{tpu_custom_call.1} parent=1 // pred_region
      _
    $region5: #{tpu_custom_call.1} parent=1 // pred_fallthru
      _
    // Predicated region
    $region6: #{tpu_custom_call.1} parent=1 // pred_check
      _
    $region7: #{tpu_custom_call.1} parent=1 // pred_check_branch
      %12 = sbr.rel (0) target = $region9
    $region8: #{tpu_custom_call.1} parent=1 // pred_region
      _
    $region9: #{tpu_custom_call.1} parent=1 // pred_fallthru
      _
    // Predicated region
    $region10: #{tpu_custom_call.1} parent=1 // pred_check
      _
    $region11: #{tpu_custom_call.1} parent=1 // pred_check_branch
      %14 = sbr.rel (0) target = $region13
    $region12: #{tpu_custom_call.1} parent=1 // pred_region
      _
    $region13: #{tpu_custom_call.1} parent=1 // pred_fallthru
      _
    %v15 = vld [vmem:[%s0] sm:$0xff]
    %v16 = vld [vmem:[%s0 + $0x8] sm:$0xff]
    %v17 = vld [vmem:[%s0 + $0x10] sm:$0xff]
    %v18 = vld [vmem:[%s0 + $0x18] sm:$0xff]
    %v19 = vld [vmem:[%s1] sm:$0xff]
    %v20 = vld [vmem:[%s1 + $0x8] sm:$0xf]
    %v21 = vld [vmem:[%s2] sm:$0x1]
    %v23 = vlaneseq
    %v24 = vshrl.u32 %v23, 7
    %v25 = vsub.s32 0, %v24
    %v26 = vrot.slane %v21, %v25
    %vm28 = vcmask 97280
    %v30 = vsel %vm28, %v15, 0
    %v33 = vsel %vm28, %v16, 0
    %v36 = vsel %vm28, %v17, 0
    %v39 = vsel %vm28, %v18, 0
    %vm41 = vcmask 1043456
    %v43 = vsel %vm41, %v20, 0
    %45 = vmatprep.subr.mxu0 0.0
    %46 = vmatpush1.msra.mxu0 0.0
    %47 = vmatprep.subr.mxu0 0.0
    %48 = vmatpush1.msra.mxu0 0.0
    %49 = vmatprep.subr.mxu0 0.0
    %50 = vmatpush1.msra.mxu0 0.0
    %51 = vmatprep.subr.mxu0 0.0
    %52 = vmatpush1.msra.mxu0 0.0
    %53 = vmatprep.subr.mxu0 0.0
    %54 = vmatpush1.msra.mxu0 0.0
    %55 = vmatprep.subr.mxu0 0.0
    %56 = vmatpush1.msra.mxu0 0.0
    %57 = vmatprep.subr.mxu0 0.0
    %58 = vmatpush1.msra.mxu0 0.0
    %59 = vmatprep.subr.mxu0 0.0
    %60 = vmatpush1.msra.mxu0 0.0
    %61 = vmatprep.subr.mxu0 0.0
    %62 = vmatpush1.msra.mxu0 0.0
    %63 = vmatprep.subr.mxu0 0.0
    %64 = vmatpush1.msra.mxu0 0.0
    %65 = vmatprep.subr.mxu0 0.0
    %66 = vmatpush1.msra.mxu0 0.0
    %67 = vmatprep.subr.mxu0 0.0
    %68 = vmatpush1.msra.mxu0 0.0
    %69 = vmatprep.subr.mxu0 0.0
    %70 = vmatpush1.msra.mxu0 0.0
    %71 = vmatprep.subr.mxu0 0.0
    %72 = vmatpush1.msra.mxu0 0.0
    %73 = vmatprep.subr.mxu0 0.0
    %74 = vmatpush1.msra.mxu0 %v43
    %75 = vmatprep.subr.mxu0 0.0
    %76 = vmatpush1.msra.mxu0 %v19
    %77 = vmatprep.subr.mxu0 0.0
    %78 = vmatpush2.msra.mxu0 0.0
    %79 = vmatprep.subr.mxu0 0.0
    %80 = vmatpush2.msra.mxu0 0.0
    %81 = vmatprep.subr.mxu0 0.0
    %82 = vmatpush2.msra.mxu0 0.0
    %83 = vmatprep.subr.mxu0 0.0
    %84 = vmatpush2.msra.mxu0 0.0
    %85 = vmatprep.subr.mxu0 0.0
    %86 = vmatpush2.msra.mxu0 0.0
    %87 = vmatprep.subr.mxu0 0.0
    %88 = vmatpush2.msra.mxu0 0.0
    %89 = vmatprep.subr.mxu0 0.0
    %90 = vmatpush2.msra.mxu0 0.0
    %91 = vmatprep.subr.mxu0 0.0
    %92 = vmatpush2.msra.mxu0 0.0
    %93 = vmatprep.subr.mxu0 0.0
    %94 = vmatpush2.msra.mxu0 0.0
    %95 = vmatprep.subr.mxu0 0.0
    %96 = vmatpush2.msra.mxu0 0.0
    %97 = vmatprep.subr.mxu0 0.0
    %98 = vmatpush2.msra.mxu0 0.0
    %99 = vmatprep.subr.mxu0 0.0
    %100 = vmatpush2.msra.mxu0 0.0
    %101 = vmatprep.subr.mxu0 0.0
    %102 = vmatpush2.msra.mxu0 0.0
    %103 = vmatprep.subr.mxu0 0.0
    %104 = vmatpush2.msra.mxu0 0.0
    %105 = vmatprep.subr.mxu0 0.0
    %106 = vmatpush2.msra.mxu0 0.0
    %107 = vmatprep.subr.mxu0 0.0
    %108 = vmatpush2.msra.mxu0 0.0
    %109 = vmatprep.mubr.f32.mxu0 0.0
    %110 = vmatmul.mubr.f32.gmra.mxu0 %v30
    %v111 = vpop.f32.mrf.mxu0
    %v112 = vadd.f32 %v26, %v111
    %v113 = vpop.f32.mrf.mxu0
    %114 = vmatprep.mubr.f32.mxu0 0.0
    %115 = vmatmul.mubr.f32.gmra.mxu0 %v33
    %v116 = vpop.f32.mrf.mxu0
    %v117 = vadd.f32 %v26, %v116
    %v118 = vpop.f32.mrf.mxu0
    %119 = vmatprep.mubr.f32.mxu0 0.0
    %120 = vmatmul.mubr.f32.gmra.mxu0 %v36
    %v121 = vpop.f32.mrf.mxu0
    %v122 = vadd.f32 %v26, %v121
    %v123 = vpop.f32.mrf.mxu0
    %124 = vmatprep.mubr.f32.mxu0 0.0
    %125 = vmatmul.mubr.f32.gmra.mxu0 %v39
    %v126 = vpop.f32.mrf.mxu0
    %v127 = vadd.f32 %v26, %v126
    %v128 = vpop.f32.mrf.mxu0
    %129 = vdwg.mxu0
    %130 = vst [vmem:[#allocation2] sm:$0xff] %v112
    %131 = vst [vmem:[#allocation2 + $0x8] sm:$0xff] %v117
    %132 = vst [vmem:[#allocation2 + $0x10] sm:$0xff] %v122
    %133 = vst [vmem:[#allocation2 + $0x18] sm:$0xff] %v127
    // Predicated region
    $region14: #{tpu_custom_call.1} parent=1 // pred_check
      _
    $region15: #{tpu_custom_call.1} parent=1 // pred_check_branch
      %135 = sbr.rel (0) target = $region17
    $region16: #{tpu_custom_call.1} parent=1 // pred_region
      %s137 = ssub.s32 512, 512
      %138 = vsyncadd [#allocation3], %s137
      %s139 = sshll.u32 [#allocation2], 4
      %s140 = int_to_ptr.vmem [resolvable:$true] %s139
      %145 = dma.vmem_to_hbm [thread:$0]  %s140, 512, %s3, [#allocation3], 128, 128, 8
    $region17: #{tpu_custom_call.1} parent=1 // pred_fallthru
      _
    // Predicated region
    $region18: #{tpu_custom_call.1} parent=1 // pred_check
      _
    $region19: #{tpu_custom_call.1} parent=1 // pred_check_branch
      %147 = sbr.rel (0) target = $region21
    $region20: #{tpu_custom_call.1} parent=1 // pred_region
      %148 = dma.done [#allocation3], 512
    $region21: #{tpu_custom_call.1} parent=1 // pred_fallthru
      _
    %149 = vsyncpa [#allocation3], 1

</llo_original>
